<compile_context>
chip_gen: v5e
topology: v5e:2x2
jax: 0.10.0
libtpu: 0.0.40
codegen_flags: <defaults>
</compile_context>

<pallas_src>
import functools

import jax
import jax.numpy as jnp
from jax.experimental import pallas as pl
from jax.experimental.pallas import tpu as pltpu

HID1 = 128                      # fc1 width (per twin)
HID2 = 32                       # fc2 / act_fc1 width (per twin)
L1_LANES = 2 * HID1 + 2 * HID2  # 320 fused layer-1 output lanes
OUT_LANES = 128                 # lane-dense output slab width


def _round_up(x, m):
    return (x + m - 1) // m * m


# ----------------------------- Pallas kernel -------------------------------
def twin_q_kernel(state_ref, idx_ref, label_ref, wA_ref, w2_ref, w3_ref,
                  out_ref, *, r_idx, r_lab, r_b):
    """Fused twin-Q forward.

    wA layout (rows, 320), all segment starts 8-row aligned:
      rows [0, sd)             : fc1 rows for `state`      (lanes 0:256)
      rows [r_idx, r_idx+p)    : fc1 rows for `set_indices`(lanes 0:256)
      rows [r_lab, r_lab+ad)   : act_fc1 rows for `label`  (lanes 256:320)
      rows [r_b, r_b+8)        : biases (row 0: layer-1, row 1: fc2, row 2: fc3)
    w2: (256, 64) block-diagonal fused fc2.
    w3: (128, 128) fused fc3, only lanes 0:2 non-zero (rows 0:64 act on the
        state path, rows 64:128 on the action path).
    """
    f32 = jnp.float32
    sd = state_ref.shape[1]
    p = idx_ref.shape[1]
    ad = label_ref.shape[1]

    b1 = wA_ref[r_b:r_b + 1, :]                         # (1, 320)
    b2 = wA_ref[r_b + 1:r_b + 2, 0:2 * HID2]            # (1, 64)
    b3 = wA_ref[r_b + 2:r_b + 3, 0:OUT_LANES]           # (1, 128)

    # Layer 1: fused fc1 (both twins) + act_fc1 (both twins) as three
    # accumulating MXU dots against static row segments (concat-free).
    h = jnp.dot(state_ref[...], wA_ref[0:sd, :], preferred_element_type=f32)
    h = h + jnp.dot(idx_ref[...].astype(f32), wA_ref[r_idx:r_idx + p, :],
                    preferred_element_type=f32)
    h = h + jnp.dot(label_ref[...], wA_ref[r_lab:r_lab + ad, :],
                    preferred_element_type=f32)
    h = jnp.maximum(h + b1, 0.0)                        # (B, 320)
    h1 = h[:, 0:2 * HID1]                               # (B, 256) fc1 out
    ao = h[:, 2 * HID1:2 * HID1 + 2 * HID2]             # (B, 64)  act_fc1 out

    # Layer 2: block-diagonal fused fc2 -> state_output for both twins.
    so = jnp.maximum(
        jnp.dot(h1, w2_ref[...], preferred_element_type=f32) + b2, 0.0)

    # Layer 3: fc3 on cat(state_output, action_output), concat-free, padded to
    # a lane-dense (B, 128) output slab (cols 0:1 = q1, 1:2 = q2, rest zero).
    out = (jnp.dot(so, w3_ref[0:2 * HID2, :], preferred_element_type=f32)
           + jnp.dot(ao, w3_ref[2 * HID2:4 * HID2, :],
                     preferred_element_type=f32)
           + b3)
    out_ref[...] = out


# ----------------------------- Wrapper --------------------------------------
def twinned_q_forward(state, label, action, set_indices, weights, cfg):
    """TwinnedQNetwork.forward(state, label, action, set_indices) -> (q1, q2)."""
    del action  # unused downstream, per the PyTorch argument-order quirk
    B, sd = state.shape
    p = set_indices.shape[1]
    ad = label.shape[1]
    wA, w2, w3 = weights

    # Batch tiling: tiny batches run as one full block; otherwise guarantee
    # >= 2 grid steps (v7x two-TC split) with a 4096-row per-step cap.
    if B <= 16:
        block_b = B
    else:
        block_b = min(4096, _round_up(pl.cdiv(B, 2), 8))
    grid = (pl.cdiv(B, block_b),)
    n_steps = grid[0]

    # Memory-bound cost hint for the XLA scheduler.
    flops = 2 * B * ((sd + p + ad) * L1_LANES
                     + (2 * HID1) * (2 * HID2)
                     + (4 * HID2) * OUT_LANES)
    bytes_accessed = (B * (sd + p + ad) * 4 + B * OUT_LANES * 4
                      + n_steps * 4 * (wA.size + w2.size + w3.size))
    cost = pl.CostEstimate(flops=flops, transcendentals=0,
                           bytes_accessed=bytes_accessed)

    kernel = functools.partial(twin_q_kernel, **cfg)
    out = pl.pallas_call(
        kernel,
        out_shape=jax.ShapeDtypeStruct((B, OUT_LANES), jnp.float32),
        grid=grid,
        in_specs=[
            pl.BlockSpec((block_b, sd), lambda i: (i, 0)),
            pl.BlockSpec((block_b, p), lambda i: (i, 0)),
            pl.BlockSpec((block_b, ad), lambda i: (i, 0)),
            # Weight blocks: constant index_map -> stay resident across grid.
            pl.BlockSpec(wA.shape, lambda i: (0, 0)),
            pl.BlockSpec(w2.shape, lambda i: (0, 0)),
            pl.BlockSpec(w3.shape, lambda i: (0, 0)),
        ],
        out_specs=pl.BlockSpec((block_b, OUT_LANES), lambda i: (i, 0)),
        compiler_params=pltpu.CompilerParams(
            dimension_semantics=("parallel",)),
        cost_estimate=cost,
    )(state, set_indices, label, wA, w2, w3)
    # Lane-dense slab -> (q1, q2) columns.
    return out[:, 0:1], out[:, 1:2]


# ----------------------------- Parameter setup ------------------------------
def init_linear(key, in_dim, out_dim):
    """Deterministic PyTorch-style Linear init: U(-1/sqrt(in), 1/sqrt(in))."""
    kw, kb = jax.random.split(key)
    bound = 1.0 / (in_dim ** 0.5)
    w = jax.random.uniform(kw, (out_dim, in_dim), jnp.float32, -bound, bound)
    b = jax.random.uniform(kb, (out_dim,), jnp.float32, -bound, bound)
    return w, b


def init_qnn_raw(key, state_dim, action_dim, prev_indices):
    """Raw QNNNetwork params in PyTorch (out, in) layout."""
    k1, k2, k3, k4 = jax.random.split(key, 4)
    w1, b1 = init_linear(k1, state_dim + prev_indices, HID1)   # fc1
    w2, b2 = init_linear(k2, HID1, HID2)                       # fc2
    wa, ba = init_linear(k3, action_dim, HID2)                 # act_fc1
    w3, b3 = init_linear(k4, 2 * HID2, 1)                      # fc3
    return (w1, b1, w2, b2, wa, ba, w3, b3)


def pack_twin_params(p1, p2, state_dim, action_dim, prev_indices):
    """Pack both twins' parameters into three dense f32 buffers."""
    sd, p, ad = state_dim, prev_indices, action_dim
    r_idx = _round_up(sd, 8)
    r_lab = r_idx + _round_up(p, 8)
    r_b = r_lab + _round_up(ad, 8)
    rows = r_b + 8

    (w1a, b1a, w2a, b2a, waa, baa, w3a, b3a) = p1
    (w1b, b1b, w2b, b2b, wab, bab, w3b, b3b) = p2

    # --- Buffer A: fused layer-1 weights + biases, (rows, 320) ---------------
    WA = jnp.zeros((rows, L1_LANES), jnp.float32)
    WA = WA.at[0:sd, 0:HID1].set(w1a[:, 0:sd].T)
    WA = WA.at[0:sd, HID1:2 * HID1].set(w1b[:, 0:sd].T)
    WA = WA.at[r_idx:r_idx + p, 0:HID1].set(w1a[:, sd:sd + p].T)
    WA = WA.at[r_idx:r_idx + p, HID1:2 * HID1].set(w1b[:, sd:sd + p].T)
    WA = WA.at[r_lab:r_lab + ad, 2 * HID1:2 * HID1 + HID2].set(waa.T)
    WA = WA.at[r_lab:r_lab + ad, 2 * HID1 + HID2:2 * HID1 + 2 * HID2].set(wab.T)
    # Bias rows.
    WA = WA.at[r_b + 0, 0:HID1].set(b1a)
    WA = WA.at[r_b + 0, HID1:2 * HID1].set(b1b)
    WA = WA.at[r_b + 0, 2 * HID1:2 * HID1 + HID2].set(baa)
    WA = WA.at[r_b + 0, 2 * HID1 + HID2:2 * HID1 + 2 * HID2].set(bab)
    WA = WA.at[r_b + 1, 0:HID2].set(b2a)
    WA = WA.at[r_b + 1, HID2:2 * HID2].set(b2b)
    WA = WA.at[r_b + 2, 0].set(b3a[0])
    WA = WA.at[r_b + 2, 1].set(b3b[0])

    # --- Buffer W2: block-diagonal fused fc2, (256, 64) ----------------------
    W2 = jnp.zeros((2 * HID1, 2 * HID2), jnp.float32)
    W2 = W2.at[0:HID1, 0:HID2].set(w2a.T)
    W2 = W2.at[HID1:2 * HID1, HID2:2 * HID2].set(w2b.T)

    # --- Buffer W3: fused fc3 padded to 128 output lanes, (128, 128) ---------
    # Rows 0:64 act on [so_q1, so_q2]; rows 64:128 on [ao_q1, ao_q2].
    W3 = jnp.zeros((4 * HID2, OUT_LANES), jnp.float32)
    W3 = W3.at[0:HID2, 0].set(w3a[0, 0:HID2])
    W3 = W3.at[HID2:2 * HID2, 1].set(w3b[0, 0:HID2])
    W3 = W3.at[2 * HID2:3 * HID2, 0].set(w3a[0, HID2:2 * HID2])
    W3 = W3.at[3 * HID2:4 * HID2, 1].set(w3b[0, HID2:2 * HID2])

    cfg = dict(r_idx=r_idx, r_lab=r_lab, r_b=r_b)
    return (WA, W2, W3), cfg


# ---------------------------------- main ------------------------------------
if __name__ == "__main__":
    B = 2
    state_dim = 8
    action_dim = 4
    prev_actions = 4

    root = jax.random.PRNGKey(0)
    kp1, kp2, ks, kl, ka, ki = jax.random.split(root, 6)

    raw_q1 = init_qnn_raw(kp1, state_dim, action_dim, prev_actions)
    raw_q2 = init_qnn_raw(kp2, state_dim, action_dim, prev_actions)
    weights, cfg = pack_twin_params(raw_q1, raw_q2,
                                    state_dim, action_dim, prev_actions)

    state = jax.random.normal(ks, (B, state_dim), jnp.float32)
    label = jax.random.normal(kl, (B, action_dim), jnp.float32)   # feeds act_fc1
    action = jax.random.normal(ka, (B, action_dim), jnp.float32)  # unused
    set_indices = (jax.random.uniform(ki, (B, prev_actions)) > 0.5).astype(jnp.int32)

    q1, q2 = twinned_q_forward(state, label, action, set_indices, weights, cfg)
    jax.block_until_ready((q1, q2))

    # Pure-JAX reference using the UNFUSED raw params (validates the packing).
    def ref_qnn(st, act_in, set_idx, prm):
        w1, b1, w2, b2, wa, ba, w3, b3 = prm
        x = jnp.concatenate([st, set_idx.astype(jnp.float32)], axis=1)
        h = jnp.maximum(x @ w1.T + b1, 0.0)
        so = jnp.maximum(h @ w2.T + b2, 0.0)
        ao = jnp.maximum(act_in @ wa.T + ba, 0.0)
        sh = jnp.concatenate([so, ao], axis=1)
        return sh @ w3.T + b3

    r1 = ref_qnn(state, label, set_indices, raw_q1)
    r2 = ref_qnn(state, label, set_indices, raw_q2)
    assert q1.shape == (B, 1) and q2.shape == (B, 1)
    assert jnp.allclose(q1, r1, atol=1e-4, rtol=1e-4)
    assert jnp.allclose(q2, r2, atol=1e-4, rtol=1e-4)

    print("KERNEL_OK")
</pallas_src>

<mosaic_0001>
module attributes {stable_mosaic.version = 11 : i64} {
  func.func @twin_q_kernel(%arg0: i32, %arg1: memref<2x8xf32, #tpu.memory_space<vmem>>, %arg2: memref<2x4xi32, #tpu.memory_space<vmem>>, %arg3: memref<2x4xf32, #tpu.memory_space<vmem>>, %arg4: memref<32x320xf32, #tpu.memory_space<vmem>>, %arg5: memref<256x64xf32, #tpu.memory_space<vmem>>, %arg6: memref<128x128xf32, #tpu.memory_space<vmem>>, %arg7: memref<2x128xf32, #tpu.memory_space<vmem>>) attributes {dimension_semantics = [#tpu.dimension_semantics<parallel>], iteration_bounds = array<i64: 1>, scalar_prefetch = 0 : i64, scratch_operands = 0 : i64, tpu.core_type = #tpu.core_type<tc>, window_params = [{transform_indices = @transform_0, window_bounds = array<i64: 2, 8>}, {transform_indices = @transform_1, window_bounds = array<i64: 2, 4>}, {transform_indices = @transform_2, window_bounds = array<i64: 2, 4>}, {pipeline_mode = #tpu.pipeline_mode<synchronous>, transform_indices = @transform_3, window_bounds = array<i64: 32, 320>}, {pipeline_mode = #tpu.pipeline_mode<synchronous>, transform_indices = @transform_4, window_bounds = array<i64: 256, 64>}, {pipeline_mode = #tpu.pipeline_mode<synchronous>, transform_indices = @transform_5, window_bounds = array<i64: 128, 128>}, {transform_indices = @transform_6, window_bounds = array<i64: 2, 128>}]} {
    %c24 = arith.constant 24 : index
    %c0 = arith.constant 0 : index
    %0 = vector.load %arg4[%c24, %c0] : memref<32x320xf32, #tpu.memory_space<vmem>>, vector<1x320xf32>
    %c25 = arith.constant 25 : index
    %c0_0 = arith.constant 0 : index
    %1 = vector.load %arg4[%c25, %c0_0] : memref<32x320xf32, #tpu.memory_space<vmem>>, vector<1x64xf32>
    %c26 = arith.constant 26 : index
    %c0_1 = arith.constant 0 : index
    %2 = vector.load %arg4[%c26, %c0_1] : memref<32x320xf32, #tpu.memory_space<vmem>>, vector<1x128xf32>
    %c0_2 = arith.constant 0 : index
    %c0_3 = arith.constant 0 : index
    %3 = vector.load %arg1[%c0_2, %c0_3] : memref<2x8xf32, #tpu.memory_space<vmem>>, vector<2x8xf32>
    %c0_4 = arith.constant 0 : index
    %c0_5 = arith.constant 0 : index
    %4 = vector.load %arg4[%c0_4, %c0_5] : memref<32x320xf32, #tpu.memory_space<vmem>>, vector<8x320xf32>
    %cst = arith.constant dense<0.000000e+00> : vector<2x320xf32>
    %5 = tpu.matmul %3, %4, %cst {dimension_numbers = #tpu.dot_dimension_numbers<[1], [0], [0], [1], [0, 0, 1, 1], [], []>} : vector<2x8xf32>, vector<8x320xf32>, vector<2x320xf32> -> vector<2x320xf32>
    %c0_6 = arith.constant 0 : index
    %c0_7 = arith.constant 0 : index
    %6 = vector.load %arg2[%c0_6, %c0_7] : memref<2x4xi32, #tpu.memory_space<vmem>>, vector<2x4xi32>
    %7 = arith.sitofp %6 : vector<2x4xi32> to vector<2x4xf32>
    %c8 = arith.constant 8 : index
    %c0_8 = arith.constant 0 : index
    %8 = vector.load %arg4[%c8, %c0_8] : memref<32x320xf32, #tpu.memory_space<vmem>>, vector<4x320xf32>
    %cst_9 = arith.constant dense<0.000000e+00> : vector<2x320xf32>
    %9 = tpu.matmul %7, %8, %cst_9 {dimension_numbers = #tpu.dot_dimension_numbers<[1], [0], [0], [1], [0, 0, 1, 1], [], []>} : vector<2x4xf32>, vector<4x320xf32>, vector<2x320xf32> -> vector<2x320xf32>
    %10 = arith.addf %5, %9 : vector<2x320xf32>
    %c0_10 = arith.constant 0 : index
    %c0_11 = arith.constant 0 : index
    %11 = vector.load %arg3[%c0_10, %c0_11] : memref<2x4xf32, #tpu.memory_space<vmem>>, vector<2x4xf32>
    %c16 = arith.constant 16 : index
    %c0_12 = arith.constant 0 : index
    %12 = vector.load %arg4[%c16, %c0_12] : memref<32x320xf32, #tpu.memory_space<vmem>>, vector<4x320xf32>
    %cst_13 = arith.constant dense<0.000000e+00> : vector<2x320xf32>
    %13 = tpu.matmul %11, %12, %cst_13 {dimension_numbers = #tpu.dot_dimension_numbers<[1], [0], [0], [1], [0, 0, 1, 1], [], []>} : vector<2x4xf32>, vector<4x320xf32>, vector<2x320xf32> -> vector<2x320xf32>
    %14 = arith.addf %10, %13 : vector<2x320xf32>
    %15 = vector.broadcast %0 : vector<1x320xf32> to vector<2x320xf32>
    %16 = arith.addf %14, %15 : vector<2x320xf32>
    %cst_14 = arith.constant 0.000000e+00 : f32
    %17 = vector.broadcast %cst_14 : f32 to vector<2x320xf32>
    %18 = arith.maximumf %16, %17 : vector<2x320xf32>
    %19 = vector.extract_strided_slice %18 {offsets = [0, 0], sizes = [2, 256], strides = [1, 1]} : vector<2x320xf32> to vector<2x256xf32>
    %20 = vector.extract_strided_slice %18 {offsets = [0, 256], sizes = [2, 64], strides = [1, 1]} : vector<2x320xf32> to vector<2x64xf32>
    %c0_15 = arith.constant 0 : index
    %c0_16 = arith.constant 0 : index
    %21 = vector.load %arg5[%c0_15, %c0_16] : memref<256x64xf32, #tpu.memory_space<vmem>>, vector<256x64xf32>
    %cst_17 = arith.constant dense<0.000000e+00> : vector<2x64xf32>
    %22 = tpu.matmul %19, %21, %cst_17 {dimension_numbers = #tpu.dot_dimension_numbers<[1], [0], [0], [1], [0, 0, 1, 1], [], []>} : vector<2x256xf32>, vector<256x64xf32>, vector<2x64xf32> -> vector<2x64xf32>
    %23 = vector.broadcast %1 : vector<1x64xf32> to vector<2x64xf32>
    %24 = arith.addf %22, %23 : vector<2x64xf32>
    %cst_18 = arith.constant 0.000000e+00 : f32
    %25 = vector.broadcast %cst_18 : f32 to vector<2x64xf32>
    %26 = arith.maximumf %24, %25 : vector<2x64xf32>
    %c0_19 = arith.constant 0 : index
    %c0_20 = arith.constant 0 : index
    %27 = vector.load %arg6[%c0_19, %c0_20] : memref<128x128xf32, #tpu.memory_space<vmem>>, vector<64x128xf32>
    %cst_21 = arith.constant dense<0.000000e+00> : vector<2x128xf32>
    %28 = tpu.matmul %26, %27, %cst_21 {dimension_numbers = #tpu.dot_dimension_numbers<[1], [0], [0], [1], [0, 0, 1, 1], [], []>} : vector<2x64xf32>, vector<64x128xf32>, vector<2x128xf32> -> vector<2x128xf32>
    %c64 = arith.constant 64 : index
    %c0_22 = arith.constant 0 : index
    %29 = vector.load %arg6[%c64, %c0_22] : memref<128x128xf32, #tpu.memory_space<vmem>>, vector<64x128xf32>
    %cst_23 = arith.constant dense<0.000000e+00> : vector<2x128xf32>
    %30 = tpu.matmul %20, %29, %cst_23 {dimension_numbers = #tpu.dot_dimension_numbers<[1], [0], [0], [1], [0, 0, 1, 1], [], []>} : vector<2x64xf32>, vector<64x128xf32>, vector<2x128xf32> -> vector<2x128xf32>
    %31 = arith.addf %28, %30 : vector<2x128xf32>
    %32 = vector.broadcast %2 : vector<1x128xf32> to vector<2x128xf32>
    %33 = arith.addf %31, %32 : vector<2x128xf32>
    %c0_24 = arith.constant 0 : index
    %c0_25 = arith.constant 0 : index
    %34 = vector.load %arg7[%c0_24, %c0_25] : memref<2x128xf32, #tpu.memory_space<vmem>>, vector<2x128xf32>
    tpu.vector_store %arg7[%c0_24, %c0_25], %33 {strides = array<i32>} : memref<2x128xf32, #tpu.memory_space<vmem>>, vector<2x128xf32>,
    return
  }
  func.func @transform_0(%arg0: i32) -> (i32, i32) {
    %c0_i32 = arith.constant 0 : i32
    %c0_i32_0 = arith.constant 0 : i32
    return %arg0, %c0_i32 : i32, i32
  }
  func.func @transform_1(%arg0: i32) -> (i32, i32) {
    %c0_i32 = arith.constant 0 : i32
    %c0_i32_0 = arith.constant 0 : i32
    return %arg0, %c0_i32 : i32, i32
  }
  func.func @transform_2(%arg0: i32) -> (i32, i32) {
    %c0_i32 = arith.constant 0 : i32
    %c0_i32_0 = arith.constant 0 : i32
    return %arg0, %c0_i32 : i32, i32
  }
  func.func @transform_3(%arg0: i32) -> (i32, i32) {
    %c0_i32 = arith.constant 0 : i32
    %c0_i32_0 = arith.constant 0 : i32
    %c0_i32_1 = arith.constant 0 : i32
    return %c0_i32, %c0_i32_0 : i32, i32
  }
  func.func @transform_4(%arg0: i32) -> (i32, i32) {
    %c0_i32 = arith.constant 0 : i32
    %c0_i32_0 = arith.constant 0 : i32
    %c0_i32_1 = arith.constant 0 : i32
    return %c0_i32, %c0_i32_0 : i32, i32
  }
  func.func @transform_5(%arg0: i32) -> (i32, i32) {
    %c0_i32 = arith.constant 0 : i32
    %c0_i32_0 = arith.constant 0 : i32
    %c0_i32_1 = arith.constant 0 : i32
    return %c0_i32, %c0_i32_0 : i32, i32
  }
  func.func @transform_6(%arg0: i32) -> (i32, i32) {
    %c0_i32 = arith.constant 0 : i32
    %c0_i32_0 = arith.constant 0 : i32
    return %arg0, %c0_i32 : i32, i32
  }
}

</mosaic_0001>

<llo_original>
// kernel: tpu_custom_call.1
$region0: #{tpu_custom_call.1}
  #allocation0 [shape = 'u32[]', space=smem, size = 0x4, offset = 0x4, fixed_abs, tag = 'smem constant byte address 0x4 - core index']
  #allocation1 [shape = 'u32[72,128]{1,0:T(1,128)}', space=vmem, size = 0x9000, scoped, tag = 'internal scratch']
  %s0 = inlined_call_operand.vmem [shape: f32[2,8], index: 0, kind: input, shape index: {}]
  %s1 = inlined_call_operand.vmem [shape: s32[2,4], index: 1, kind: input, shape index: {}]
  %s2 = inlined_call_operand.vmem [shape: f32[2,4], index: 2, kind: input, shape index: {}]
  %s3 = inlined_call_operand.vmem [shape: f32[32,320], index: 3, kind: input, shape index: {}]
  %s4 = inlined_call_operand.vmem [shape: f32[256,64], index: 4, kind: input, shape index: {}]
  %s5 = inlined_call_operand.vmem [shape: f32[128,128], index: 5, kind: input, shape index: {}]
  %s6 = inlined_call_operand.hbm [shape: f32[2,128], index: 6, kind: output, shape index: {}]
  %s7 = sld [smem:[#allocation0]]
  $region34: #{tpu_custom_call.1} parent=0
    _
  %s9 = ssub.s32 1, %s7
  %s10 = scalar_select 0, %s9, %s7
  $region1: #{tpu_custom_call.1} parent=0
    #allocation2 [shape = 'u8[1024]{0}', space=vmem, size = 0x400, scoped, tag = 'output window, operand 0, single buffered']
    #allocation3 [shape = 's32[1]{0}', space=sflag, size = 0x4, scoped, tag = 'scoped memory for tpu_custom_call.1']
    %11 = vsyncpa [#allocation3], 0
    // Predicated region
    $region2: #{tpu_custom_call.1} parent=1 // pred_check
      _
    $region3: #{tpu_custom_call.1} parent=1 // pred_check_branch
      %13 = sbr.rel (0) target = $region5
    $region4: #{tpu_custom_call.1} parent=1 // pred_region
      _
    $region5: #{tpu_custom_call.1} parent=1 // pred_fallthru
      _
    // Predicated region
    $region6: #{tpu_custom_call.1} parent=1 // pred_check
      _
    $region7: #{tpu_custom_call.1} parent=1 // pred_check_branch
      %15 = sbr.rel (0) target = $region9
    $region8: #{tpu_custom_call.1} parent=1 // pred_region
      _
    $region9: #{tpu_custom_call.1} parent=1 // pred_fallthru
      _
    // Predicated region
    $region10: #{tpu_custom_call.1} parent=1 // pred_check
      _
    $region11: #{tpu_custom_call.1} parent=1 // pred_check_branch
      %17 = sbr.rel (0) target = $region13
    $region12: #{tpu_custom_call.1} parent=1 // pred_region
      _
    $region13: #{tpu_custom_call.1} parent=1 // pred_fallthru
      _
    // Predicated region
    $region14: #{tpu_custom_call.1} parent=1 // pred_check
      _
    $region15: #{tpu_custom_call.1} parent=1 // pred_check_branch
      %19 = sbr.rel (0) target = $region17
    $region16: #{tpu_custom_call.1} parent=1 // pred_region
      _
    $region17: #{tpu_custom_call.1} parent=1 // pred_fallthru
      _
    // Predicated region
    $region18: #{tpu_custom_call.1} parent=1 // pred_check
      _
    $region19: #{tpu_custom_call.1} parent=1 // pred_check_branch
      %21 = sbr.rel (0) target = $region21
    $region20: #{tpu_custom_call.1} parent=1 // pred_region
      _
    $region21: #{tpu_custom_call.1} parent=1 // pred_fallthru
      _
    // Predicated region
    $region22: #{tpu_custom_call.1} parent=1 // pred_check
      _
    $region23: #{tpu_custom_call.1} parent=1 // pred_check_branch
      %23 = sbr.rel (0) target = $region25
    $region24: #{tpu_custom_call.1} parent=1 // pred_region
      _
    $region25: #{tpu_custom_call.1} parent=1 // pred_fallthru
      _
    %s24 = scalar_lea.vmem %s3, 72
    %v25 = vld [vmem:[%s24] ss:$8 sm:$0x7]
    %v26 = vld [vmem:[%s3 + $0x49] ss:$0 sm:$0xff]
    %v27 = vld [vmem:[%s3 + $0x4a] ss:$0 sm:$0xff]
    %v28 = vld [vmem:[%s0] sm:$0x3]
    %v29 = vld [vmem:[%s3] sm:$0xff]
    %v30 = vld [vmem:[%s3 + $0x8] sm:$0xff]
    %v31 = vld [vmem:[%s3 + $0x10] sm:$0xff]
    %v32 = vld [vmem:[%s1] sm:$0x3]
    %v33 = vcvt.s32.f32 %v32
    %v34 = vld [vmem:[%s3 + $0x18] sm:$0xf]
    %v35 = vld [vmem:[%s3 + $0x20] sm:$0xf]
    %v36 = vld [vmem:[%s3 + $0x28] sm:$0xf]
    %vm37 = vcmask 31744
    %v39 = vsel %vm37, %v33, 0
    %vm41 = vcmask 1043456
    %v43 = vsel %vm41, %v34, 0
    %v46 = vsel %vm41, %v35, 0
    %v49 = vsel %vm41, %v36, 0
    %51 = vmatpush.msra.mxu0 0.0
    %52 = vmatpush.msra.mxu0 0.0
    %53 = vmatpush.msra.mxu0 0.0
    %54 = vmatpush.msra.mxu0 0.0
    %55 = vmatpush.msra.mxu0 0.0
    %56 = vmatpush.msra.mxu0 0.0
    %57 = vmatpush.msra.mxu0 0.0
    %58 = vmatpush.msra.mxu0 0.0
    %59 = vmatpush.msra.mxu0 0.0
    %60 = vmatpush.msra.mxu0 0.0
    %61 = vmatpush.msra.mxu0 0.0
    %62 = vmatpush.msra.mxu0 0.0
    %63 = vmatpush.msra.mxu0 0.0
    %64 = vmatpush.msra.mxu0 0.0
    %65 = vmatpush.msra.mxu0 0.0
    %66 = vmatpush.msra.mxu0 %v43
    %67 = vmatmul.f32.gmra.mxu0 %v39
    %v68 = vpop.f32.mrf.mxu0
    %v69 = vadd.f32 0.0, %v68
    %70 = vdwg.mxu0
    %71 = vmatpush.msra.mxu0 0.0
    %72 = vmatpush.msra.mxu0 0.0
    %73 = vmatpush.msra.mxu0 0.0
    %74 = vmatpush.msra.mxu0 0.0
    %75 = vmatpush.msra.mxu0 0.0
    %76 = vmatpush.msra.mxu0 0.0
    %77 = vmatpush.msra.mxu0 0.0
    %78 = vmatpush.msra.mxu0 0.0
    %79 = vmatpush.msra.mxu0 0.0
    %80 = vmatpush.msra.mxu0 0.0
    %81 = vmatpush.msra.mxu0 0.0
    %82 = vmatpush.msra.mxu0 0.0
    %83 = vmatpush.msra.mxu0 0.0
    %84 = vmatpush.msra.mxu0 0.0
    %85 = vmatpush.msra.mxu0 0.0
    %86 = vmatpush.msra.mxu0 %v46
    %87 = vmatmul.f32.gmra.mxu0 %v39
    %v88 = vpop.f32.mrf.mxu0
    %v89 = vadd.f32 0.0, %v88
    %90 = vdwg.mxu0
    %91 = vmatpush.msra.mxu0 0.0
    %92 = vmatpush.msra.mxu0 0.0
    %93 = vmatpush.msra.mxu0 0.0
    %94 = vmatpush.msra.mxu0 0.0
    %95 = vmatpush.msra.mxu0 0.0
    %96 = vmatpush.msra.mxu0 0.0
    %97 = vmatpush.msra.mxu0 0.0
    %98 = vmatpush.msra.mxu0 0.0
    %99 = vmatpush.msra.mxu0 0.0
    %100 = vmatpush.msra.mxu0 0.0
    %101 = vmatpush.msra.mxu0 0.0
    %102 = vmatpush.msra.mxu0 0.0
    %103 = vmatpush.msra.mxu0 0.0
    %104 = vmatpush.msra.mxu0 0.0
    %105 = vmatpush.msra.mxu0 0.0
    %106 = vmatpush.msra.mxu0 %v49
    %107 = vmatmul.f32.gmra.mxu0 %v39
    %v108 = vpop.f32.mrf.mxu0
    %v109 = vadd.f32 0.0, %v108
    %110 = vdwg.mxu0
    %vm111 = vcmask 64512
    %v113 = vsel %vm111, %v28, 0
    %115 = vmatpush.msra.mxu0 0.0
    %116 = vmatpush.msra.mxu0 0.0
    %117 = vmatpush.msra.mxu0 0.0
    %118 = vmatpush.msra.mxu0 0.0
    %119 = vmatpush.msra.mxu0 0.0
    %120 = vmatpush.msra.mxu0 0.0
    %121 = vmatpush.msra.mxu0 0.0
    %122 = vmatpush.msra.mxu0 0.0
    %123 = vmatpush.msra.mxu0 0.0
    %124 = vmatpush.msra.mxu0 0.0
    %125 = vmatpush.msra.mxu0 0.0
    %126 = vmatpush.msra.mxu0 0.0
    %127 = vmatpush.msra.mxu0 0.0
    %128 = vmatpush.msra.mxu0 0.0
    %129 = vmatpush.msra.mxu0 0.0
    %130 = vmatpush.msra.mxu0 %v29
    %131 = vmatmul.f32.gmra.mxu0 %v113
    %v132 = vpop.f32.mrf.mxu0
    %v133 = vadd.f32 %v69, %v132
    %134 = vdwg.mxu0
    %135 = vmatpush.msra.mxu0 0.0
    %136 = vmatpush.msra.mxu0 0.0
    %137 = vmatpush.msra.mxu0 0.0
    %138 = vmatpush.msra.mxu0 0.0
    %139 = vmatpush.msra.mxu0 0.0
    %140 = vmatpush.msra.mxu0 0.0
    %141 = vmatpush.msra.mxu0 0.0
    %142 = vmatpush.msra.mxu0 0.0
    %143 = vmatpush.msra.mxu0 0.0
    %144 = vmatpush.msra.mxu0 0.0
    %145 = vmatpush.msra.mxu0 0.0
    %146 = vmatpush.msra.mxu0 0.0
    %147 = vmatpush.msra.mxu0 0.0
    %148 = vmatpush.msra.mxu0 0.0
    %149 = vmatpush.msra.mxu0 0.0
    %150 = vmatpush.msra.mxu0 %v30
    %151 = vmatmul.f32.gmra.mxu0 %v113
    %v152 = vpop.f32.mrf.mxu0
    %v153 = vadd.f32 %v89, %v152
    %154 = vdwg.mxu0
    %155 = vmatpush.msra.mxu0 0.0
    %156 = vmatpush.msra.mxu0 0.0
    %157 = vmatpush.msra.mxu0 0.0
    %158 = vmatpush.msra.mxu0 0.0
    %159 = vmatpush.msra.mxu0 0.0
    %160 = vmatpush.msra.mxu0 0.0
    %161 = vmatpush.msra.mxu0 0.0
    %162 = vmatpush.msra.mxu0 0.0
    %163 = vmatpush.msra.mxu0 0.0
    %164 = vmatpush.msra.mxu0 0.0
    %165 = vmatpush.msra.mxu0 0.0
    %166 = vmatpush.msra.mxu0 0.0
    %167 = vmatpush.msra.mxu0 0.0
    %168 = vmatpush.msra.mxu0 0.0
    %169 = vmatpush.msra.mxu0 0.0
    %170 = vmatpush.msra.mxu0 %v31
    %171 = vmatmul.f32.gmra.mxu0 %v113
    %v172 = vpop.f32.mrf.mxu0
    %v173 = vadd.f32 %v109, %v172
    %174 = vdwg.mxu0
    %v175 = vld [vmem:[%s2] sm:$0x3]
    %v176 = vld [vmem:[%s3 + $0x30] sm:$0xf]
    %v177 = vld [vmem:[%s3 + $0x38] sm:$0xf]
    %v178 = vld [vmem:[%s3 + $0x40] sm:$0xf]
    %v180 = vsel %vm37, %v175, 0
    %v183 = vsel %vm41, %v176, 0
    %v186 = vsel %vm41, %v177, 0
    %v189 = vsel %vm41, %v178, 0
    %191 = vmatpush.msra.mxu0 0.0
    %192 = vmatpush.msra.mxu0 0.0
    %193 = vmatpush.msra.mxu0 0.0
    %194 = vmatpush.msra.mxu0 0.0
    %195 = vmatpush.msra.mxu0 0.0
    %196 = vmatpush.msra.mxu0 0.0
    %197 = vmatpush.msra.mxu0 0.0
    %198 = vmatpush.msra.mxu0 0.0
    %199 = vmatpush.msra.mxu0 0.0
    %200 = vmatpush.msra.mxu0 0.0
    %201 = vmatpush.msra.mxu0 0.0
    %202 = vmatpush.msra.mxu0 0.0
    %203 = vmatpush.msra.mxu0 0.0
    %204 = vmatpush.msra.mxu0 0.0
    %205 = vmatpush.msra.mxu0 0.0
    %206 = vmatpush.msra.mxu0 %v183
    %207 = vmatmul.f32.gmra.mxu0 %v180
    %v208 = vpop.f32.mrf.mxu0
    %v209 = vadd.f32 0.0, %v208
    %210 = vdwg.mxu0
    %211 = vmatpush.msra.mxu0 0.0
    %212 = vmatpush.msra.mxu0 0.0
    %213 = vmatpush.msra.mxu0 0.0
    %214 = vmatpush.msra.mxu0 0.0
    %215 = vmatpush.msra.mxu0 0.0
    %216 = vmatpush.msra.mxu0 0.0
    %217 = vmatpush.msra.mxu0 0.0
    %218 = vmatpush.msra.mxu0 0.0
    %219 = vmatpush.msra.mxu0 0.0
    %220 = vmatpush.msra.mxu0 0.0
    %221 = vmatpush.msra.mxu0 0.0
    %222 = vmatpush.msra.mxu0 0.0
    %223 = vmatpush.msra.mxu0 0.0
    %224 = vmatpush.msra.mxu0 0.0
    %225 = vmatpush.msra.mxu0 0.0
    %226 = vmatpush.msra.mxu0 %v186
    %227 = vmatmul.f32.gmra.mxu0 %v180
    %v228 = vpop.f32.mrf.mxu0
    %v229 = vadd.f32 0.0, %v228
    %230 = vdwg.mxu0
    %231 = vmatpush.msra.mxu0 0.0
    %232 = vmatpush.msra.mxu0 0.0
    %233 = vmatpush.msra.mxu0 0.0
    %234 = vmatpush.msra.mxu0 0.0
    %235 = vmatpush.msra.mxu0 0.0
    %236 = vmatpush.msra.mxu0 0.0
    %237 = vmatpush.msra.mxu0 0.0
    %238 = vmatpush.msra.mxu0 0.0
    %239 = vmatpush.msra.mxu0 0.0
    %240 = vmatpush.msra.mxu0 0.0
    %241 = vmatpush.msra.mxu0 0.0
    %242 = vmatpush.msra.mxu0 0.0
    %243 = vmatpush.msra.mxu0 0.0
    %244 = vmatpush.msra.mxu0 0.0
    %245 = vmatpush.msra.mxu0 0.0
    %246 = vmatpush.msra.mxu0 %v189
    %247 = vmatmul.f32.gmra.mxu0 %v180
    %v248 = vpop.f32.mrf.mxu0
    %v249 = vadd.f32 0.0, %v248
    %250 = vdwg.mxu0
    %v251 = vadd.f32 %v133, %v209
    %v252 = vadd.f32 %v153, %v229
    %v253 = vadd.f32 %v173, %v249
    %v255 = vperm.slane %v25, 0
    %v256 = vperm.slane %v25, 1
    %v257 = vperm.slane %v25, 2
    %v261 = vadd.f32 %v251, %v255
    %v262 = vadd.f32 %v252, %v256
    %v263 = vadd.f32 %v253, %v257
    %v264 = vmax.f32 %v261, 0.0
    %v265 = vmax.f32 %v262, 0.0
    %v266 = vmax.f32 %v263, 0.0
    %v267 = vld [vmem:[%s4] sm:$0xff]
    %v268 = vld [vmem:[%s4 + $0x8] sm:$0xff]
    %v269 = vld [vmem:[%s4 + $0x10] sm:$0xff]
    %v270 = vld [vmem:[%s4 + $0x18] sm:$0xff]
    %v271 = vld [vmem:[%s4 + $0x20] sm:$0xff]
    %v272 = vld [vmem:[%s4 + $0x28] sm:$0xff]
    %v273 = vld [vmem:[%s4 + $0x30] sm:$0xff]
    %v274 = vld [vmem:[%s4 + $0x38] sm:$0xff]
    %v275 = vld [vmem:[%s4 + $0x40] sm:$0xff]
    %v276 = vld [vmem:[%s4 + $0x48] sm:$0xff]
    %v277 = vld [vmem:[%s4 + $0x50] sm:$0xff]
    %v278 = vld [vmem:[%s4 + $0x58] sm:$0xff]
    %v279 = vld [vmem:[%s4 + $0x60] sm:$0xff]
    %v280 = vld [vmem:[%s4 + $0x68] sm:$0xff]
    %v281 = vld [vmem:[%s4 + $0x70] sm:$0xff]
    %v282 = vld [vmem:[%s4 + $0x78] sm:$0xff]
    %v283 = vld [vmem:[%s4 + $0x80] sm:$0xff]
    %v284 = vld [vmem:[%s4 + $0x88] sm:$0xff]
    %v285 = vld [vmem:[%s4 + $0x90] sm:$0xff]
    %v286 = vld [vmem:[%s4 + $0x98] sm:$0xff]
    %v287 = vld [vmem:[%s4 + $0xa0] sm:$0xff]
    %v288 = vld [vmem:[%s4 + $0xa8] sm:$0xff]
    %v289 = vld [vmem:[%s4 + $0xb0] sm:$0xff]
    %v290 = vld [vmem:[%s4 + $0xb8] sm:$0xff]
    %v291 = vld [vmem:[%s4 + $0xc0] sm:$0xff]
    %v292 = vld [vmem:[%s4 + $0xc8] sm:$0xff]
    %v293 = vld [vmem:[%s4 + $0xd0] sm:$0xff]
    %v294 = vld [vmem:[%s4 + $0xd8] sm:$0xff]
    %v295 = vld [vmem:[%s4 + $0xe0] sm:$0xff]
    %v296 = vld [vmem:[%s4 + $0xe8] sm:$0xff]
    %v297 = vld [vmem:[%s4 + $0xf0] sm:$0xff]
    %v298 = vld [vmem:[%s4 + $0xf8] sm:$0xff]
    %299 = vmatpush.msra.mxu0 %v282
    %300 = vmatpush.msra.mxu0 %v281
    %301 = vmatpush.msra.mxu0 %v280
    %302 = vmatpush.msra.mxu0 %v279
    %303 = vmatpush.msra.mxu0 %v278
    %304 = vmatpush.msra.mxu0 %v277
    %305 = vmatpush.msra.mxu0 %v276
    %306 = vmatpush.msra.mxu0 %v275
    %307 = vmatpush.msra.mxu0 %v274
    %308 = vmatpush.msra.mxu0 %v273
    %309 = vmatpush.msra.mxu0 %v272
    %310 = vmatpush.msra.mxu0 %v271
    %311 = vmatpush.msra.mxu0 %v270
    %312 = vmatpush.msra.mxu0 %v269
    %313 = vmatpush.msra.mxu0 %v268
    %314 = vmatpush.msra.mxu0 %v267
    %315 = vmatmul.f32.gmra.mxu0 %v264
    %v316 = vpop.f32.mrf.mxu0
    %v317 = vadd.f32 %v26, %v316
    %318 = vdwg.mxu0
    %319 = vmatpush.msra.mxu0 %v298
    %320 = vmatpush.msra.mxu0 %v297
    %321 = vmatpush.msra.mxu0 %v296
    %322 = vmatpush.msra.mxu0 %v295
    %323 = vmatpush.msra.mxu0 %v294
    %324 = vmatpush.msra.mxu0 %v293
    %325 = vmatpush.msra.mxu0 %v292
    %326 = vmatpush.msra.mxu0 %v291
    %327 = vmatpush.msra.mxu0 %v290
    %328 = vmatpush.msra.mxu0 %v289
    %329 = vmatpush.msra.mxu0 %v288
    %330 = vmatpush.msra.mxu0 %v287
    %331 = vmatpush.msra.mxu0 %v286
    %332 = vmatpush.msra.mxu0 %v285
    %333 = vmatpush.msra.mxu0 %v284
    %334 = vmatpush.msra.mxu0 %v283
    %335 = vmatmul.f32.gmra.mxu0 %v265
    %v336 = vpop.f32.mrf.mxu0
    %v337 = vadd.f32 %v317, %v336
    %338 = vdwg.mxu0
    %v339 = vmax.f32 %v337, 0.0
    %v340 = vld [vmem:[%s5] sm:$0xff]
    %v341 = vld [vmem:[%s5 + $0x8] sm:$0xff]
    %v342 = vld [vmem:[%s5 + $0x10] sm:$0xff]
    %v343 = vld [vmem:[%s5 + $0x18] sm:$0xff]
    %v344 = vld [vmem:[%s5 + $0x20] sm:$0xff]
    %v345 = vld [vmem:[%s5 + $0x28] sm:$0xff]
    %v346 = vld [vmem:[%s5 + $0x30] sm:$0xff]
    %v347 = vld [vmem:[%s5 + $0x38] sm:$0xff]
    %v348 = vld [vmem:[%s5 + $0x40] sm:$0xff]
    %v349 = vld [vmem:[%s5 + $0x48] sm:$0xff]
    %v350 = vld [vmem:[%s5 + $0x50] sm:$0xff]
    %v351 = vld [vmem:[%s5 + $0x58] sm:$0xff]
    %v352 = vld [vmem:[%s5 + $0x60] sm:$0xff]
    %v353 = vld [vmem:[%s5 + $0x68] sm:$0xff]
    %v354 = vld [vmem:[%s5 + $0x70] sm:$0xff]
    %v355 = vld [vmem:[%s5 + $0x78] sm:$0xff]
    %vm356 = vcmask 523264
    %v358 = vsel %vm356, %v266, 0
    %360 = vmatpush.msra.mxu0 0.0
    %361 = vmatpush.msra.mxu0 0.0
    %362 = vmatpush.msra.mxu0 0.0
    %363 = vmatpush.msra.mxu0 0.0
    %364 = vmatpush.msra.mxu0 0.0
    %365 = vmatpush.msra.mxu0 0.0
    %366 = vmatpush.msra.mxu0 0.0
    %367 = vmatpush.msra.mxu0 0.0
    %368 = vmatpush.msra.mxu0 %v355
    %369 = vmatpush.msra.mxu0 %v354
    %370 = vmatpush.msra.mxu0 %v353
    %371 = vmatpush.msra.mxu0 %v352
    %372 = vmatpush.msra.mxu0 %v351
    %373 = vmatpush.msra.mxu0 %v350
    %374 = vmatpush.msra.mxu0 %v349
    %375 = vmatpush.msra.mxu0 %v348
    %376 = vmatmul.f32.gmra.mxu0 %v358
    %v377 = vpop.f32.mrf.mxu0
    %v378 = vadd.f32 0.0, %v377
    %379 = vdwg.mxu0
    %v381 = vsel %vm356, %v339, 0
    %383 = vmatpush.msra.mxu0 0.0
    %384 = vmatpush.msra.mxu0 0.0
    %385 = vmatpush.msra.mxu0 0.0
    %386 = vmatpush.msra.mxu0 0.0
    %387 = vmatpush.msra.mxu0 0.0
    %388 = vmatpush.msra.mxu0 0.0
    %389 = vmatpush.msra.mxu0 0.0
    %390 = vmatpush.msra.mxu0 0.0
    %391 = vmatpush.msra.mxu0 %v347
    %392 = vmatpush.msra.mxu0 %v346
    %393 = vmatpush.msra.mxu0 %v345
    %394 = vmatpush.msra.mxu0 %v344
    %395 = vmatpush.msra.mxu0 %v343
    %396 = vmatpush.msra.mxu0 %v342
    %397 = vmatpush.msra.mxu0 %v341
    %398 = vmatpush.msra.mxu0 %v340
    %399 = vmatmul.f32.gmra.mxu0 %v381
    %v400 = vpop.f32.mrf.mxu0
    %v401 = vadd.f32 %v378, %v400
    %402 = vdwg.mxu0
    %v403 = vadd.f32 %v401, %v27
    %404 = vst [vmem:[#allocation2] sm:$0x3] %v403
    // Predicated region
    $region26: #{tpu_custom_call.1} parent=1 // pred_check
      _
    $region27: #{tpu_custom_call.1} parent=1 // pred_check_branch
      %406 = sbr.rel (0) target = $region29
    $region28: #{tpu_custom_call.1} parent=1 // pred_region
      %408 = vsyncadd [#allocation3], 0
      %s410 = sshll.u32 [#allocation2], 4
      %s411 = int_to_ptr.vmem [resolvable:$true] %s410
      %s412 = sshll.u32 %s6, 4
      %s413 = int_to_ptr.hbm [resolvable:$true] %s412
      %415 = dma.vmem_to_hbm [thread:$0]  %s411, 32, %s413, [#allocation3]
    $region29: #{tpu_custom_call.1} parent=1 // pred_fallthru
      _
    // Predicated region
    $region30: #{tpu_custom_call.1} parent=1 // pred_check
      _
    $region31: #{tpu_custom_call.1} parent=1 // pred_check_branch
      %417 = sbr.rel (0) target = $region33
    $region32: #{tpu_custom_call.1} parent=1 // pred_region
      %419 = dma.done [#allocation3], 32
    $region33: #{tpu_custom_call.1} parent=1 // pred_fallthru
      _
    %420 = vsyncpa [#allocation3], 1

</llo_original>
